<compile_context>
chip_gen: v7x
topology: tpu7x:2x2x1
jax: 0.10.0
libtpu: 0.0.40
codegen_flags: <defaults>
</compile_context>

<pallas_src>
import functools

import jax
import jax.numpy as jnp
from jax.experimental import pallas as pl
from jax.experimental.pallas import tpu as pltpu


def _round_up(x, m):
    return (x + m - 1) // m * m


# Largest batch tile. At mid=1024: resident bf16 weights ~4.2 MiB + double-
# buffered x/out1/out2/out3 tiles ~6.3 MiB -> fits every generation's default
# scoped VMEM (v5e 16 MiB, v6e/v7x 32 MiB, v7x physical 64 MiB).
_TM_MAX = 512


def _dense3_kernel(x_ref, w1_ref, b1_ref, w2_ref, b2_ref, w3_ref, b3_ref,
                   o1_ref, o2_ref, o3_ref):
    """Fused fc1 -> ReLU -> fc2 -> ReLU -> fc3 for one batch tile.

    Weights/biases are VMEM-resident across the whole grid (constant
    index_map). Matmuls run on the MXU in bf16 with f32 accumulation; bias add
    / ReLU run on the f32 accumulator on the VPU; intermediates are stored as
    bf16 (exactly what the next layer consumes), final logits as f32.
    """
    # Layer 1
    h1 = jnp.dot(x_ref[...], w1_ref[...], preferred_element_type=jnp.float32)
    h1 = jnp.maximum(h1 + b1_ref[...], 0.0)
    h1_bf16 = h1.astype(jnp.bfloat16)
    o1_ref[...] = h1_bf16

    # Layer 2
    h2 = jnp.dot(h1_bf16, w2_ref[...], preferred_element_type=jnp.float32)
    h2 = jnp.maximum(h2 + b2_ref[...], 0.0)
    h2_bf16 = h2.astype(jnp.bfloat16)
    o2_ref[...] = h2_bf16

    # Layer 3 (no ReLU); output slab is lane-dense (N padded to 128).
    h3 = jnp.dot(h2_bf16, w3_ref[...], preferred_element_type=jnp.float32)
    o3_ref[...] = (h3 + b3_ref[...]).astype(o3_ref.dtype)


def _dense1_kernel(x_ref, w1_ref, b1_ref, o1_ref):
    """one_layer=True path: single fused linear + ReLU."""
    h1 = jnp.dot(x_ref[...], w1_ref[...], preferred_element_type=jnp.float32)
    o1_ref[...] = jnp.maximum(h1 + b1_ref[...], 0.0).astype(o1_ref.dtype)


def init_dense_net_params(key, input_dim=28 * 28, out_dim=20, mid=1024,
                          one_layer=False):
    """Init mimicking nn.Linear's uniform(-1/sqrt(fan_in), +1/sqrt(fan_in)).

    Weights are stored pre-transposed as (in, out), cast to bf16, and
    zero-padded to lane-aligned shapes so y = x @ W + b is exact on the
    un-padded region. Biases stay f32.
    Returns (params, meta) where meta holds the static padding info.
    """
    assert mid % 128 == 0, "mid must be a multiple of 128 (lane-dense tiles)"
    k_pad = _round_up(input_dim, 128)
    n_pad = _round_up(out_dim, 128)

    def linear_init(k, fan_in, fan_out, pad_in, pad_out):
        kw, kb = jax.random.split(k)
        bound = 1.0 / jnp.sqrt(fan_in)
        w = jax.random.uniform(kw, (fan_in, fan_out), jnp.float32, -bound, bound)
        b = jax.random.uniform(kb, (1, fan_out), jnp.float32, -bound, bound)
        w = jnp.pad(w, ((0, pad_in - fan_in), (0, pad_out - fan_out)))
        b = jnp.pad(b, ((0, 0), (0, pad_out - fan_out)))
        return w.astype(jnp.bfloat16), b  # bf16 weights, f32 bias

    params = {}
    k1, k2, k3 = jax.random.split(key, 3)
    params["fc1"] = linear_init(k1, input_dim, mid, k_pad, mid)
    if not one_layer:
        params["fc2"] = linear_init(k2, mid, mid, mid, mid)
        params["fc3"] = linear_init(k3, mid, out_dim, mid, n_pad)

    meta = dict(input_dim=input_dim, out_dim=out_dim, mid=mid,
                k_pad=k_pad, n_pad=n_pad)
    return params, meta


def dense_net_forward(params, x, *, meta, one_layer=False):
    M, K = x.shape
    assert K == meta["input_dim"]
    mid = meta["mid"]
    assert mid % 128 == 0, "mid must be a multiple of 128 (lane-dense tiles)"
    k_pad, n_pad, out_dim = meta["k_pad"], meta["n_pad"], meta["out_dim"]

    # Batch tiling: every block is dense (sublane-aligned for bf16), grid over
    # batch tiles; last tile padded with zero rows, sliced back off below.
    tm = min(_TM_MAX, _round_up(M, 16))
    m_pad = _round_up(M, tm)
    grid = (m_pad // tm,)

    # Lane-align K once and feed the MXU bf16 operands.
    x_p = jnp.pad(x, ((0, m_pad - M), (0, k_pad - K))).astype(jnp.bfloat16)

    x_spec = pl.BlockSpec((tm, k_pad), lambda i: (i, 0))

    def _resident(arr):
        # Full-array block with a constant index_map: DMA'd once, stays in
        # VMEM across all batch-tile steps.
        return pl.BlockSpec(arr.shape, lambda i: (0, 0))

    cparams = pltpu.CompilerParams(dimension_semantics=("parallel",))

    if one_layer:
        w1, b1 = params["fc1"]
        out1 = pl.pallas_call(
            _dense1_kernel,
            out_shape=jax.ShapeDtypeStruct((m_pad, mid), jnp.float32),
            grid=grid,
            in_specs=[x_spec, _resident(w1), _resident(b1)],
            out_specs=pl.BlockSpec((tm, mid), lambda i: (i, 0)),
            compiler_params=cparams,
        )(x_p, w1, b1)
        return [out1[:M]]

    w1, b1 = params["fc1"]
    w2, b2 = params["fc2"]
    w3, b3 = params["fc3"]
    out1, out2, out3_p = pl.pallas_call(
        _dense3_kernel,
        out_shape=(
            jax.ShapeDtypeStruct((m_pad, mid), jnp.bfloat16),
            jax.ShapeDtypeStruct((m_pad, mid), jnp.bfloat16),
            jax.ShapeDtypeStruct((m_pad, n_pad), jnp.float32),
        ),
        grid=grid,
        in_specs=[x_spec,
                  _resident(w1), _resident(b1),
                  _resident(w2), _resident(b2),
                  _resident(w3), _resident(b3)],
        out_specs=(pl.BlockSpec((tm, mid), lambda i: (i, 0)),
                   pl.BlockSpec((tm, mid), lambda i: (i, 0)),
                   pl.BlockSpec((tm, n_pad), lambda i: (i, 0))),
        compiler_params=cparams,
    )(x_p, w1, b1, w2, b2, w3, b3)

    # Slice batch/lane padding back off to preserve the module's return
    # shapes (consumers that tolerate the 128-lane out3 slab may skip this).
    return [out1[:M], out2[:M], out3_p[:M, :out_dim]]


if __name__ == "__main__":
    # Small shapes consistent with the module: batch=4, input_dim=784 (28*28),
    # mid=256, out_dim=20.
    batch, input_dim, mid, out_dim = 4, 28 * 28, 256, 20

    key = jax.random.PRNGKey(0)
    kx, kp = jax.random.split(key)
    x = jax.random.normal(kx, (batch, input_dim), dtype=jnp.float32)
    params, meta = init_dense_net_params(kp, input_dim, out_dim, mid,
                                         one_layer=False)

    fwd = jax.jit(functools.partial(dense_net_forward, meta=meta,
                                    one_layer=False))
    outs = fwd(params, x)
    outs = [jax.block_until_ready(o) for o in outs]

    # Reference in plain JAX f32, using the (dequantized) bf16 weights so the
    # only mismatch is bf16 activation rounding.
    w1 = params["fc1"][0].astype(jnp.float32)[:input_dim, :]
    b1 = params["fc1"][1]
    w2 = params["fc2"][0].astype(jnp.float32)
    b2 = params["fc2"][1]
    w3 = params["fc3"][0].astype(jnp.float32)[:, :out_dim]
    b3 = params["fc3"][1][:, :out_dim]
    r1 = jnp.maximum(x @ w1 + b1, 0.0)
    r2 = jnp.maximum(r1 @ w2 + b2, 0.0)
    r3 = r2 @ w3 + b3
    refs = [r1, r2, r3]

    for o, r in zip(outs, refs):
        assert o.shape == r.shape, (o.shape, r.shape)
        assert jnp.allclose(o.astype(jnp.float32), r, atol=3e-2,
                            rtol=3e-2), float(
            jnp.max(jnp.abs(o.astype(jnp.float32) - r)))

    # Also exercise the one_layer=True path.
    params1, meta1 = init_dense_net_params(kp, input_dim, out_dim, mid,
                                           one_layer=True)
    fwd1 = jax.jit(functools.partial(dense_net_forward, meta=meta1,
                                     one_layer=True))
    (o1,) = fwd1(params1, x)
    o1 = jax.block_until_ready(o1)
    w1b = params1["fc1"][0].astype(jnp.float32)[:input_dim, :]
    b1b = params1["fc1"][1]
    r1b = jnp.maximum(x @ w1b + b1b, 0.0)
    assert o1.shape == r1b.shape
    assert jnp.allclose(o1, r1b, atol=3e-2, rtol=3e-2), float(
        jnp.max(jnp.abs(o1 - r1b)))

    print("KERNEL_OK")
</pallas_src>

<mosaic_0001>
module attributes {stable_mosaic.version = 11 : i64} {
  func.func @_dense3_kernel(%arg0: i32, %arg1: memref<16x896xbf16, #tpu.memory_space<vmem>>, %arg2: memref<896x256xbf16, #tpu.memory_space<vmem>>, %arg3: memref<1x256xf32, #tpu.memory_space<vmem>>, %arg4: memref<256x256xbf16, #tpu.memory_space<vmem>>, %arg5: memref<1x256xf32, #tpu.memory_space<vmem>>, %arg6: memref<256x128xbf16, #tpu.memory_space<vmem>>, %arg7: memref<1x128xf32, #tpu.memory_space<vmem>>, %arg8: memref<16x256xbf16, #tpu.memory_space<vmem>>, %arg9: memref<16x256xbf16, #tpu.memory_space<vmem>>, %arg10: memref<16x128xf32, #tpu.memory_space<vmem>>) attributes {dimension_semantics = [#tpu.dimension_semantics<parallel>], iteration_bounds = array<i64: 1>, scalar_prefetch = 0 : i64, scratch_operands = 0 : i64, tpu.core_type = #tpu.core_type<tc>, window_params = [{transform_indices = @transform_0, window_bounds = array<i64: 16, 896>}, {pipeline_mode = #tpu.pipeline_mode<synchronous>, transform_indices = @transform_1, window_bounds = array<i64: 896, 256>}, {pipeline_mode = #tpu.pipeline_mode<synchronous>, transform_indices = @transform_2, window_bounds = array<i64: 1, 256>}, {pipeline_mode = #tpu.pipeline_mode<synchronous>, transform_indices = @transform_3, window_bounds = array<i64: 256, 256>}, {pipeline_mode = #tpu.pipeline_mode<synchronous>, transform_indices = @transform_4, window_bounds = array<i64: 1, 256>}, {pipeline_mode = #tpu.pipeline_mode<synchronous>, transform_indices = @transform_5, window_bounds = array<i64: 256, 128>}, {pipeline_mode = #tpu.pipeline_mode<synchronous>, transform_indices = @transform_6, window_bounds = array<i64: 1, 128>}, {transform_indices = @transform_7, window_bounds = array<i64: 16, 256>}, {transform_indices = @transform_8, window_bounds = array<i64: 16, 256>}, {transform_indices = @transform_9, window_bounds = array<i64: 16, 128>}]} {
    %c0 = arith.constant 0 : index
    %c0_0 = arith.constant 0 : index
    %0 = vector.load %arg1[%c0, %c0_0] : memref<16x896xbf16, #tpu.memory_space<vmem>>, vector<16x896xbf16>
    %c0_1 = arith.constant 0 : index
    %c0_2 = arith.constant 0 : index
    %1 = vector.load %arg2[%c0_1, %c0_2] : memref<896x256xbf16, #tpu.memory_space<vmem>>, vector<896x256xbf16>
    %cst = arith.constant dense<0.000000e+00> : vector<16x256xf32>
    %2 = tpu.matmul %0, %1, %cst {dimension_numbers = #tpu.dot_dimension_numbers<[1], [0], [0], [1], [0, 0, 1, 1], [], []>} : vector<16x896xbf16>, vector<896x256xbf16>, vector<16x256xf32> -> vector<16x256xf32>
    %c0_3 = arith.constant 0 : index
    %c0_4 = arith.constant 0 : index
    %3 = vector.load %arg3[%c0_3, %c0_4] : memref<1x256xf32, #tpu.memory_space<vmem>>, vector<1x256xf32>
    %4 = vector.broadcast %3 : vector<1x256xf32> to vector<16x256xf32>
    %5 = arith.addf %2, %4 : vector<16x256xf32>
    %cst_5 = arith.constant 0.000000e+00 : f32
    %6 = vector.broadcast %cst_5 : f32 to vector<16x256xf32>
    %7 = arith.maximumf %5, %6 : vector<16x256xf32>
    %8 = arith.truncf %7 : vector<16x256xf32> to vector<16x256xbf16>
    %c0_6 = arith.constant 0 : index
    %c0_7 = arith.constant 0 : index
    %9 = vector.load %arg8[%c0_6, %c0_7] : memref<16x256xbf16, #tpu.memory_space<vmem>>, vector<16x256xbf16>
    tpu.vector_store %arg8[%c0_6, %c0_7], %8 {strides = array<i32>} : memref<16x256xbf16, #tpu.memory_space<vmem>>, vector<16x256xbf16>,
    %c0_8 = arith.constant 0 : index
    %c0_9 = arith.constant 0 : index
    %10 = vector.load %arg4[%c0_8, %c0_9] : memref<256x256xbf16, #tpu.memory_space<vmem>>, vector<256x256xbf16>
    %cst_10 = arith.constant dense<0.000000e+00> : vector<16x256xf32>
    %11 = tpu.matmul %8, %10, %cst_10 {dimension_numbers = #tpu.dot_dimension_numbers<[1], [0], [0], [1], [0, 0, 1, 1], [], []>} : vector<16x256xbf16>, vector<256x256xbf16>, vector<16x256xf32> -> vector<16x256xf32>
    %c0_11 = arith.constant 0 : index
    %c0_12 = arith.constant 0 : index
    %12 = vector.load %arg5[%c0_11, %c0_12] : memref<1x256xf32, #tpu.memory_space<vmem>>, vector<1x256xf32>
    %13 = vector.broadcast %12 : vector<1x256xf32> to vector<16x256xf32>
    %14 = arith.addf %11, %13 : vector<16x256xf32>
    %cst_13 = arith.constant 0.000000e+00 : f32
    %15 = vector.broadcast %cst_13 : f32 to vector<16x256xf32>
    %16 = arith.maximumf %14, %15 : vector<16x256xf32>
    %17 = arith.truncf %16 : vector<16x256xf32> to vector<16x256xbf16>
    %c0_14 = arith.constant 0 : index
    %c0_15 = arith.constant 0 : index
    %18 = vector.load %arg9[%c0_14, %c0_15] : memref<16x256xbf16, #tpu.memory_space<vmem>>, vector<16x256xbf16>
    tpu.vector_store %arg9[%c0_14, %c0_15], %17 {strides = array<i32>} : memref<16x256xbf16, #tpu.memory_space<vmem>>, vector<16x256xbf16>,
    %c0_16 = arith.constant 0 : index
    %c0_17 = arith.constant 0 : index
    %19 = vector.load %arg6[%c0_16, %c0_17] : memref<256x128xbf16, #tpu.memory_space<vmem>>, vector<256x128xbf16>
    %cst_18 = arith.constant dense<0.000000e+00> : vector<16x128xf32>
    %20 = tpu.matmul %17, %19, %cst_18 {dimension_numbers = #tpu.dot_dimension_numbers<[1], [0], [0], [1], [0, 0, 1, 1], [], []>} : vector<16x256xbf16>, vector<256x128xbf16>, vector<16x128xf32> -> vector<16x128xf32>
    %c0_19 = arith.constant 0 : index
    %c0_20 = arith.constant 0 : index
    %21 = vector.load %arg7[%c0_19, %c0_20] : memref<1x128xf32, #tpu.memory_space<vmem>>, vector<1x128xf32>
    %22 = vector.broadcast %21 : vector<1x128xf32> to vector<16x128xf32>
    %23 = arith.addf %20, %22 : vector<16x128xf32>
    %c0_21 = arith.constant 0 : index
    %c0_22 = arith.constant 0 : index
    %24 = vector.load %arg10[%c0_21, %c0_22] : memref<16x128xf32, #tpu.memory_space<vmem>>, vector<16x128xf32>
    tpu.vector_store %arg10[%c0_21, %c0_22], %23 {strides = array<i32>} : memref<16x128xf32, #tpu.memory_space<vmem>>, vector<16x128xf32>,
    return
  }
  func.func @transform_0(%arg0: i32) -> (i32, i32) {
    %c0_i32 = arith.constant 0 : i32
    %c0_i32_0 = arith.constant 0 : i32
    return %arg0, %c0_i32 : i32, i32
  }
  func.func @transform_1(%arg0: i32) -> (i32, i32) {
    %c0_i32 = arith.constant 0 : i32
    %c0_i32_0 = arith.constant 0 : i32
    %c0_i32_1 = arith.constant 0 : i32
    return %c0_i32, %c0_i32_0 : i32, i32
  }
  func.func @transform_2(%arg0: i32) -> (i32, i32) {
    %c0_i32 = arith.constant 0 : i32
    %c0_i32_0 = arith.constant 0 : i32
    %c0_i32_1 = arith.constant 0 : i32
    return %c0_i32, %c0_i32_0 : i32, i32
  }
  func.func @transform_3(%arg0: i32) -> (i32, i32) {
    %c0_i32 = arith.constant 0 : i32
    %c0_i32_0 = arith.constant 0 : i32
    %c0_i32_1 = arith.constant 0 : i32
    return %c0_i32, %c0_i32_0 : i32, i32
  }
  func.func @transform_4(%arg0: i32) -> (i32, i32) {
    %c0_i32 = arith.constant 0 : i32
    %c0_i32_0 = arith.constant 0 : i32
    %c0_i32_1 = arith.constant 0 : i32
    return %c0_i32, %c0_i32_0 : i32, i32
  }
  func.func @transform_5(%arg0: i32) -> (i32, i32) {
    %c0_i32 = arith.constant 0 : i32
    %c0_i32_0 = arith.constant 0 : i32
    %c0_i32_1 = arith.constant 0 : i32
    return %c0_i32, %c0_i32_0 : i32, i32
  }
  func.func @transform_6(%arg0: i32) -> (i32, i32) {
    %c0_i32 = arith.constant 0 : i32
    %c0_i32_0 = arith.constant 0 : i32
    %c0_i32_1 = arith.constant 0 : i32
    return %c0_i32, %c0_i32_0 : i32, i32
  }
  func.func @transform_7(%arg0: i32) -> (i32, i32) {
    %c0_i32 = arith.constant 0 : i32
    %c0_i32_0 = arith.constant 0 : i32
    return %arg0, %c0_i32 : i32, i32
  }
  func.func @transform_8(%arg0: i32) -> (i32, i32) {
    %c0_i32 = arith.constant 0 : i32
    %c0_i32_0 = arith.constant 0 : i32
    return %arg0, %c0_i32 : i32, i32
  }
  func.func @transform_9(%arg0: i32) -> (i32, i32) {
    %c0_i32 = arith.constant 0 : i32
    %c0_i32_0 = arith.constant 0 : i32
    return %arg0, %c0_i32 : i32, i32
  }
}

</mosaic_0001>

<llo_original>
// kernel: dense_net_forward.1
$region0: #{dense_net_forward.1}
  #allocation0 [shape = 'u32[]', space=smem, size = 0x4, offset = 0x4, fixed_abs, tag = 'smem constant byte address 0x4 - core index']
  #allocation1 [shape = 'u32[144,128]{1,0:T(1,128)}', space=vmem, size = 0x12000, scoped, tag = 'internal scratch']
  %s0 = inlined_call_operand.vmem [shape: bf16[16,896], index: 0, kind: input, shape index: {}]
  %s1 = inlined_call_operand.hbm [shape: bf16[896,256], index: 1, kind: input, shape index: {}]
  %s2 = inlined_call_operand.hbm [shape: f32[1,256], index: 2, kind: input, shape index: {}]
  %s3 = inlined_call_operand.hbm [shape: bf16[256,256], index: 3, kind: input, shape index: {}]
  %s4 = inlined_call_operand.hbm [shape: f32[1,256], index: 4, kind: input, shape index: {}]
  %s5 = inlined_call_operand.vmem [shape: bf16[256,128], index: 5, kind: input, shape index: {}]
  %s6 = inlined_call_operand.vmem [shape: f32[1,128], index: 6, kind: input, shape index: {}]
  %s7 = inlined_call_operand.vmem [shape: bf16[16,256], index: 7, kind: output, shape index: {0}]
  %s8 = inlined_call_operand.vmem [shape: bf16[16,256], index: 8, kind: output, shape index: {1}]
  %s9 = inlined_call_operand.vmem [shape: f32[16,128], index: 9, kind: output, shape index: {2}]
  %10 = xla_tuple %s7, %s8, %s9
  %s11 = sld [smem:[#allocation0]]
  $region70: #{dense_net_forward.1} parent=0
    _
  %s13 = ssub.s32 1, %s11
  %s14 = scalar_select 0, %s13, %s11
  $region1: #{dense_net_forward.1} parent=0
    #allocation2 [shape = 'u8[458752]{0}', space=vmem, size = 0x70000, scoped, tag = 'input window, operand 1, single buffered']
    #allocation3 [shape = 's32[1]{0}', space=sflag, size = 0x4, scoped, tag = 'scoped memory for dense_net_forward.1']
    #allocation4 [shape = 'u8[1024]{0}', space=vmem, size = 0x400, scoped, tag = 'input window, operand 2, single buffered']
    #allocation5 [shape = 's32[1]{0}', space=sflag, size = 0x4, scoped, tag = 'scoped memory for dense_net_forward.1']
    #allocation6 [shape = 'u8[131072]{0}', space=vmem, size = 0x20000, scoped, tag = 'input window, operand 3, single buffered']
    #allocation7 [shape = 'u8[1024]{0}', space=vmem, size = 0x400, scoped, tag = 'input window, operand 4, single buffered']
    #allocation8 [shape = 's32[1]{0}', space=sflag, size = 0x4, scoped, tag = 'scoped memory for dense_net_forward.1']
    %15 = vsyncpa [#allocation3], 0
    %16 = vsyncpa [#allocation5], 0
    %17 = vsyncpa [#allocation8], 0
    // Predicated region
    $region2: #{dense_net_forward.1} parent=1 // pred_check
      _
    $region3: #{dense_net_forward.1} parent=1 // pred_check_branch
      %19 = sbr.rel (0) target = $region5
    $region4: #{dense_net_forward.1} parent=1 // pred_region
      _
    $region5: #{dense_net_forward.1} parent=1 // pred_fallthru
      _
    // Predicated region
    $region6: #{dense_net_forward.1} parent=1 // pred_check
      _
    $region7: #{dense_net_forward.1} parent=1 // pred_check_branch
      %21 = sbr.rel (0) target = $region9
    $region8: #{dense_net_forward.1} parent=1 // pred_region
      %s23 = ssub.s32 14336, 14336
      %24 = vsyncadd [#allocation3], %s23
      %s25 = sshll.u32 [#allocation2], 4
      %s26 = int_to_ptr.vmem [resolvable:$true] %s25
      %31 = dma.hbm_to_vmem [thread:$0]  %s1, 14336, %s26, [#allocation3], 128, 128, 8
    $region9: #{dense_net_forward.1} parent=1 // pred_fallthru
      _
    // Predicated region
    $region10: #{dense_net_forward.1} parent=1 // pred_check
      _
    $region11: #{dense_net_forward.1} parent=1 // pred_check_branch
      %33 = sbr.rel (0) target = $region13
    $region12: #{dense_net_forward.1} parent=1 // pred_region
      %s35 = ssub.s32 32, 32
      %36 = vsyncadd [#allocation5], %s35
      %s38 = sshll.u32 [#allocation4], 4
      %s39 = int_to_ptr.vmem [resolvable:$true] %s38
      %41 = dma.hbm_to_vmem [thread:$0]  %s2, 32, %s39, [#allocation5]
    $region13: #{dense_net_forward.1} parent=1 // pred_fallthru
      _
    // Predicated region
    $region14: #{dense_net_forward.1} parent=1 // pred_check
      _
    $region15: #{dense_net_forward.1} parent=1 // pred_check_branch
      %43 = sbr.rel (0) target = $region17
    $region16: #{dense_net_forward.1} parent=1 // pred_region
      %s45 = ssub.s32 4096, 4096
      %46 = vsyncadd [#allocation5], %s45
      %s47 = sshll.u32 [#allocation6], 4
      %s48 = int_to_ptr.vmem [resolvable:$true] %s47
      %53 = dma.hbm_to_vmem [thread:$0]  %s3, 4096, %s48, [#allocation5], 128, 128, 8
    $region17: #{dense_net_forward.1} parent=1 // pred_fallthru
      _
    // Predicated region
    $region18: #{dense_net_forward.1} parent=1 // pred_check
      _
    $region19: #{dense_net_forward.1} parent=1 // pred_check_branch
      %55 = sbr.rel (0) target = $region21
    $region20: #{dense_net_forward.1} parent=1 // pred_region
      %s57 = ssub.s32 32, 32
      %58 = vsyncadd [#allocation8], %s57
      %s60 = sshll.u32 [#allocation7], 4
      %s61 = int_to_ptr.vmem [resolvable:$true] %s60
      %63 = dma.hbm_to_vmem [thread:$0]  %s4, 32, %s61, [#allocation8]
    $region21: #{dense_net_forward.1} parent=1 // pred_fallthru
      _
    // Predicated region
    $region22: #{dense_net_forward.1} parent=1 // pred_check
      _
    $region23: #{dense_net_forward.1} parent=1 // pred_check_branch
      %65 = sbr.rel (0) target = $region25
    $region24: #{dense_net_forward.1} parent=1 // pred_region
      _
    $region25: #{dense_net_forward.1} parent=1 // pred_fallthru
      _
    // Predicated region
    $region26: #{dense_net_forward.1} parent=1 // pred_check
      _
    $region27: #{dense_net_forward.1} parent=1 // pred_check_branch
      %67 = sbr.rel (0) target = $region29
    $region28: #{dense_net_forward.1} parent=1 // pred_region
      _
    $region29: #{dense_net_forward.1} parent=1 // pred_fallthru
      _
    // Predicated region
    $region30: #{dense_net_forward.1} parent=1 // pred_check
      _
    $region31: #{dense_net_forward.1} parent=1 // pred_check_branch
      %69 = sbr.rel (0) target = $region33
    $region32: #{dense_net_forward.1} parent=1 // pred_region
      %70 = dma.done [#allocation3], 14336
    $region33: #{dense_net_forward.1} parent=1 // pred_fallthru
      _
    // Predicated region
    $region34: #{dense_net_forward.1} parent=1 // pred_check
      _
    $region35: #{dense_net_forward.1} parent=1 // pred_check_branch
      %72 = sbr.rel (0) target = $region37
    $region36: #{dense_net_forward.1} parent=1 // pred_region
      %73 = dma.done [#allocation5], 32
    $region37: #{dense_net_forward.1} parent=1 // pred_fallthru
      _
    // Predicated region
    $region38: #{dense_net_forward.1} parent=1 // pred_check
      _
    $region39: #{dense_net_forward.1} parent=1 // pred_check_branch
      %75 = sbr.rel (0) target = $region41
    $region40: #{dense_net_forward.1} parent=1 // pred_region
      %76 = dma.done [#allocation5], 4096
    $region41: #{dense_net_forward.1} parent=1 // pred_fallthru
      _
    // Predicated region
    $region42: #{dense_net_forward.1} parent=1 // pred_check
      _
    $region43: #{dense_net_forward.1} parent=1 // pred_check_branch
      %78 = sbr.rel (0) target = $region45
    $region44: #{dense_net_forward.1} parent=1 // pred_region
      %79 = dma.done [#allocation8], 32
    $region45: #{dense_net_forward.1} parent=1 // pred_fallthru
      _
    %v81 = vld [vmem:[%s0] sm:$0xff]
    %v82 = vld [vmem:[%s0 + $0x8] sm:$0xff]
    %v83 = vld [vmem:[%s0 + $0x10] sm:$0xff]
    %v84 = vld [vmem:[%s0 + $0x18] sm:$0xf]
    %v85 = vld [vmem:[%s0 + $0x1c] sm:$0xff]
    %v86 = vld [vmem:[%s0 + $0x24] sm:$0xff]
    %v87 = vld [vmem:[%s0 + $0x2c] sm:$0xff]
    %v88 = vld [vmem:[%s0 + $0x34] sm:$0xf]
    %v89 = vld [vmem:[#allocation2] sm:$0xff]
    %v90 = vld [vmem:[#allocation2 + $0x8] sm:$0xff]
    %v91 = vld [vmem:[#allocation2 + $0x10] sm:$0xff]
    %v92 = vld [vmem:[#allocation2 + $0x18] sm:$0xff]
    %v93 = vld [vmem:[#allocation2 + $0x20] sm:$0xff]
    %v94 = vld [vmem:[#allocation2 + $0x28] sm:$0xff]
    %v95 = vld [vmem:[#allocation2 + $0x30] sm:$0xff]
    %v96 = vld [vmem:[#allocation2 + $0x38] sm:$0xff]
    %v97 = vld [vmem:[#allocation2 + $0x40] sm:$0xff]
    %v98 = vld [vmem:[#allocation2 + $0x48] sm:$0xff]
    %v99 = vld [vmem:[#allocation2 + $0x50] sm:$0xff]
    %v100 = vld [vmem:[#allocation2 + $0x58] sm:$0xff]
    %v101 = vld [vmem:[#allocation2 + $0x60] sm:$0xff]
    %v102 = vld [vmem:[#allocation2 + $0x68] sm:$0xff]
    %v103 = vld [vmem:[#allocation2 + $0x70] sm:$0xff]
    %v104 = vld [vmem:[#allocation2 + $0x78] sm:$0xff]
    %v105 = vld [vmem:[#allocation2 + $0x80] sm:$0xff]
    %v106 = vld [vmem:[#allocation2 + $0x88] sm:$0xff]
    %v107 = vld [vmem:[#allocation2 + $0x90] sm:$0xff]
    %v108 = vld [vmem:[#allocation2 + $0x98] sm:$0xff]
    %v109 = vld [vmem:[#allocation2 + $0xa0] sm:$0xff]
    %v110 = vld [vmem:[#allocation2 + $0xa8] sm:$0xff]
    %v111 = vld [vmem:[#allocation2 + $0xb0] sm:$0xff]
    %v112 = vld [vmem:[#allocation2 + $0xb8] sm:$0xff]
    %v113 = vld [vmem:[#allocation2 + $0xc0] sm:$0xff]
    %v114 = vld [vmem:[#allocation2 + $0xc8] sm:$0xff]
    %v115 = vld [vmem:[#allocation2 + $0xd0] sm:$0xff]
    %v116 = vld [vmem:[#allocation2 + $0xd8] sm:$0xff]
    %v117 = vld [vmem:[#allocation2 + $0xe0] sm:$0xff]
    %v118 = vld [vmem:[#allocation2 + $0xe8] sm:$0xff]
    %v119 = vld [vmem:[#allocation2 + $0xf0] sm:$0xff]
    %v120 = vld [vmem:[#allocation2 + $0xf8] sm:$0xff]
    %v121 = vld [vmem:[#allocation2 + $0x100] sm:$0xff]
    %v122 = vld [vmem:[#allocation2 + $0x108] sm:$0xff]
    %v123 = vld [vmem:[#allocation2 + $0x110] sm:$0xff]
    %v124 = vld [vmem:[#allocation2 + $0x118] sm:$0xff]
    %v125 = vld [vmem:[#allocation2 + $0x120] sm:$0xff]
    %v126 = vld [vmem:[#allocation2 + $0x128] sm:$0xff]
    %v127 = vld [vmem:[#allocation2 + $0x130] sm:$0xff]
    %v128 = vld [vmem:[#allocation2 + $0x138] sm:$0xff]
    %v129 = vld [vmem:[#allocation2 + $0x140] sm:$0xff]
    %v130 = vld [vmem:[#allocation2 + $0x148] sm:$0xff]
    %v131 = vld [vmem:[#allocation2 + $0x150] sm:$0xff]
    %v132 = vld [vmem:[#allocation2 + $0x158] sm:$0xff]
    %v133 = vld [vmem:[#allocation2 + $0x160] sm:$0xff]
    %v134 = vld [vmem:[#allocation2 + $0x168] sm:$0xff]
    %v135 = vld [vmem:[#allocation2 + $0x170] sm:$0xff]
    %v136 = vld [vmem:[#allocation2 + $0x178] sm:$0xff]
    %v137 = vld [vmem:[#allocation2 + $0x180] sm:$0xff]
    %v138 = vld [vmem:[#allocation2 + $0x188] sm:$0xff]
    %v139 = vld [vmem:[#allocation2 + $0x190] sm:$0xff]
    %v140 = vld [vmem:[#allocation2 + $0x198] sm:$0xff]
    %v141 = vld [vmem:[#allocation2 + $0x1a0] sm:$0xff]
    %v142 = vld [vmem:[#allocation2 + $0x1a8] sm:$0xff]
    %v143 = vld [vmem:[#allocation2 + $0x1b0] sm:$0xff]
    %v144 = vld [vmem:[#allocation2 + $0x1b8] sm:$0xff]
    %v145 = vld [vmem:[#allocation2 + $0x1c0] sm:$0xff]
    %v146 = vld [vmem:[#allocation2 + $0x1c8] sm:$0xff]
    %v147 = vld [vmem:[#allocation2 + $0x1d0] sm:$0xff]
    %v148 = vld [vmem:[#allocation2 + $0x1d8] sm:$0xff]
    %v149 = vld [vmem:[#allocation2 + $0x1e0] sm:$0xff]
    %v150 = vld [vmem:[#allocation2 + $0x1e8] sm:$0xff]
    %v151 = vld [vmem:[#allocation2 + $0x1f0] sm:$0xff]
    %v152 = vld [vmem:[#allocation2 + $0x1f8] sm:$0xff]
    %v153 = vld [vmem:[#allocation2 + $0x200] sm:$0xff]
    %v154 = vld [vmem:[#allocation2 + $0x208] sm:$0xff]
    %v155 = vld [vmem:[#allocation2 + $0x210] sm:$0xff]
    %v156 = vld [vmem:[#allocation2 + $0x218] sm:$0xff]
    %v157 = vld [vmem:[#allocation2 + $0x220] sm:$0xff]
    %v158 = vld [vmem:[#allocation2 + $0x228] sm:$0xff]
    %v159 = vld [vmem:[#allocation2 + $0x230] sm:$0xff]
    %v160 = vld [vmem:[#allocation2 + $0x238] sm:$0xff]
    %v161 = vld [vmem:[#allocation2 + $0x240] sm:$0xff]
    %v162 = vld [vmem:[#allocation2 + $0x248] sm:$0xff]
    %v163 = vld [vmem:[#allocation2 + $0x250] sm:$0xff]
    %v164 = vld [vmem:[#allocation2 + $0x258] sm:$0xff]
    %v165 = vld [vmem:[#allocation2 + $0x260] sm:$0xff]
    %v166 = vld [vmem:[#allocation2 + $0x268] sm:$0xff]
    %v167 = vld [vmem:[#allocation2 + $0x270] sm:$0xff]
    %v168 = vld [vmem:[#allocation2 + $0x278] sm:$0xff]
    %v169 = vld [vmem:[#allocation2 + $0x280] sm:$0xff]
    %v170 = vld [vmem:[#allocation2 + $0x288] sm:$0xff]
    %v171 = vld [vmem:[#allocation2 + $0x290] sm:$0xff]
    %v172 = vld [vmem:[#allocation2 + $0x298] sm:$0xff]
    %v173 = vld [vmem:[#allocation2 + $0x2a0] sm:$0xff]
    %v174 = vld [vmem:[#allocation2 + $0x2a8] sm:$0xff]
    %v175 = vld [vmem:[#allocation2 + $0x2b0] sm:$0xff]
    %v176 = vld [vmem:[#allocation2 + $0x2b8] sm:$0xff]
    %v177 = vld [vmem:[#allocation2 + $0x2c0] sm:$0xff]
    %v178 = vld [vmem:[#allocation2 + $0x2c8] sm:$0xff]
    %v179 = vld [vmem:[#allocation2 + $0x2d0] sm:$0xff]
    %v180 = vld [vmem:[#allocation2 + $0x2d8] sm:$0xff]
    %v181 = vld [vmem:[#allocation2 + $0x2e0] sm:$0xff]
    %v182 = vld [vmem:[#allocation2 + $0x2e8] sm:$0xff]
    %v183 = vld [vmem:[#allocation2 + $0x2f0] sm:$0xff]
    %v184 = vld [vmem:[#allocation2 + $0x2f8] sm:$0xff]
    %v185 = vld [vmem:[#allocation2 + $0x300] sm:$0xff]
    %v186 = vld [vmem:[#allocation2 + $0x308] sm:$0xff]
    %v187 = vld [vmem:[#allocation2 + $0x310] sm:$0xff]
    %v188 = vld [vmem:[#allocation2 + $0x318] sm:$0xff]
    %v189 = vld [vmem:[#allocation2 + $0x320] sm:$0xff]
    %v190 = vld [vmem:[#allocation2 + $0x328] sm:$0xff]
    %v191 = vld [vmem:[#allocation2 + $0x330] sm:$0xff]
    %v192 = vld [vmem:[#allocation2 + $0x338] sm:$0xff]
    %v193 = vld [vmem:[#allocation2 + $0x340] sm:$0xff]
    %v194 = vld [vmem:[#allocation2 + $0x348] sm:$0xff]
    %v195 = vld [vmem:[#allocation2 + $0x350] sm:$0xff]
    %v196 = vld [vmem:[#allocation2 + $0x358] sm:$0xff]
    %v197 = vld [vmem:[#allocation2 + $0x360] sm:$0xff]
    %v198 = vld [vmem:[#allocation2 + $0x368] sm:$0xff]
    %v199 = vld [vmem:[#allocation2 + $0x370] sm:$0xff]
    %v200 = vld [vmem:[#allocation2 + $0x378] sm:$0xff]
    %v201 = vld [vmem:[#allocation4] sm:$0x3]
    %v203 = vlaneseq
    %v204 = vshrl.u32 %v203, 7
    %v205 = vsub.s32 0, %v204
    %v206 = vrot.slane %v201, %v205
    %v207 = vlaneseq
    %v208 = vshrl.u32 %v207, 7
    %v209 = vsub.s32 1, %v208
    %v210 = vrot.slane %v201, %v209
    %v221 = vunpack.c.l.b16 %v81
    %v222 = vunpack.c.h.b16 %v81
    %v223 = vunpack.c.l.b16 %v82
    %v224 = vunpack.c.h.b16 %v82
    %v225 = vunpack.c.l.b16 %v83
    %v226 = vunpack.c.h.b16 %v83
    %v227 = vunpack.c.l.b16 %v84
    %v228 = vunpack.c.l.b16 %v85
    %v229 = vunpack.c.h.b16 %v85
    %v230 = vunpack.c.l.b16 %v86
    %v231 = vunpack.c.h.b16 %v86
    %v232 = vunpack.c.l.b16 %v87
    %v233 = vunpack.c.h.b16 %v87
    %v234 = vunpack.c.l.b16 %v88
    %v235 = vpack.c.b16 %v228, %v221
    %v236 = vpack.c.b16 %v229, %v222
    %v237 = vpack.c.b16 %v230, %v223
    %v238 = vpack.c.b16 %v231, %v224
    %v239 = vpack.c.b16 %v232, %v225
    %v240 = vpack.c.b16 %v233, %v226
    %v241 = vpack.c.b16 %v234, %v227
    %v361 = vunpack.c.l.b16 %v89
    %v362 = vunpack.c.h.b16 %v89
    %v363 = vunpack.c.l.b16 %v90
    %v364 = vunpack.c.h.b16 %v90
    %v365 = vunpack.c.l.b16 %v91
    %v366 = vunpack.c.h.b16 %v91
    %v367 = vunpack.c.l.b16 %v92
    %v368 = vunpack.c.h.b16 %v92
    %v369 = vunpack.c.l.b16 %v93
    %v370 = vunpack.c.h.b16 %v93
    %v371 = vunpack.c.l.b16 %v94
    %v372 = vunpack.c.h.b16 %v94
    %v373 = vunpack.c.l.b16 %v95
    %v374 = vunpack.c.h.b16 %v95
    %v375 = vunpack.c.l.b16 %v96
    %v376 = vunpack.c.h.b16 %v96
    %v377 = vunpack.c.l.b16 %v97
    %v378 = vunpack.c.h.b16 %v97
    %v379 = vunpack.c.l.b16 %v98
    %v380 = vunpack.c.h.b16 %v98
    %v381 = vunpack.c.l.b16 %v99
    %v382 = vunpack.c.h.b16 %v99
    %v383 = vunpack.c.l.b16 %v100
    %v384 = vunpack.c.h.b16 %v100
    %v385 = vunpack.c.l.b16 %v101
    %v386 = vunpack.c.h.b16 %v101
    %v387 = vunpack.c.l.b16 %v102
    %v388 = vunpack.c.h.b16 %v102
    %v389 = vunpack.c.l.b16 %v103
    %v390 = vunpack.c.h.b16 %v103
    %v391 = vunpack.c.l.b16 %v104
    %v392 = vunpack.c.h.b16 %v104
    %v393 = vunpack.c.l.b16 %v105
    %v394 = vunpack.c.h.b16 %v105
    %v395 = vunpack.c.l.b16 %v106
    %v396 = vunpack.c.h.b16 %v106
    %v397 = vunpack.c.l.b16 %v107
    %v398 = vunpack.c.h.b16 %v107
    %v399 = vunpack.c.l.b16 %v108
    %v400 = vunpack.c.h.b16 %v108
    %v401 = vunpack.c.l.b16 %v109
    %v402 = vunpack.c.h.b16 %v109
    %v403 = vunpack.c.l.b16 %v110
    %v404 = vunpack.c.h.b16 %v110
    %v405 = vunpack.c.l.b16 %v111
    %v406 = vunpack.c.h.b16 %v111
    %v407 = vunpack.c.l.b16 %v112
    %v408 = vunpack.c.h.b16 %v112
    %v409 = vunpack.c.l.b16 %v113
    %v410 = vunpack.c.h.b16 %v113
    %v411 = vunpack.c.l.b16 %v114
    %v412 = vunpack.c.h.b16 %v114
    %v413 = vunpack.c.l.b16 %v115
    %v414 = vunpack.c.h.b16 %v115
    %v415 = vunpack.c.l.b16 %v116
    %v416 = vunpack.c.h.b16 %v116
    %v417 = vunpack.c.l.b16 %v117
    %v418 = vunpack.c.h.b16 %v117
    %v419 = vunpack.c.l.b16 %v118
    %v420 = vunpack.c.h.b16 %v118
    %v421 = vunpack.c.l.b16 %v119
    %v422 = vunpack.c.h.b16 %v119
    %v423 = vunpack.c.l.b16 %v120
    %v424 = vunpack.c.h.b16 %v120
    %v425 = vunpack.c.l.b16 %v121
    %v426 = vunpack.c.h.b16 %v121
    %v427 = vunpack.c.l.b16 %v122
    %v428 = vunpack.c.h.b16 %v122
    %v429 = vunpack.c.l.b16 %v123
    %v430 = vunpack.c.h.b16 %v123
    %v431 = vunpack.c.l.b16 %v124
    %v432 = vunpack.c.h.b16 %v124
    %v433 = vunpack.c.l.b16 %v125
    %v434 = vunpack.c.h.b16 %v125
    %v435 = vunpack.c.l.b16 %v126
    %v436 = vunpack.c.h.b16 %v126
    %v437 = vunpack.c.l.b16 %v127
    %v438 = vunpack.c.h.b16 %v127
    %v439 = vunpack.c.l.b16 %v128
    %v440 = vunpack.c.h.b16 %v128
    %v441 = vunpack.c.l.b16 %v129
    %v442 = vunpack.c.h.b16 %v129
    %v443 = vunpack.c.l.b16 %v130
    %v444 = vunpack.c.h.b16 %v130
    %v445 = vunpack.c.l.b16 %v131
    %v446 = vunpack.c.h.b16 %v131
    %v447 = vunpack.c.l.b16 %v132
    %v448 = vunpack.c.h.b16 %v132
    %v449 = vunpack.c.l.b16 %v133
    %v450 = vunpack.c.h.b16 %v133
    %v451 = vunpack.c.l.b16 %v134
    %v452 = vunpack.c.h.b16 %v134
    %v453 = vunpack.c.l.b16 %v135
    %v454 = vunpack.c.h.b16 %v135
    %v455 = vunpack.c.l.b16 %v136
    %v456 = vunpack.c.h.b16 %v136
    %v457 = vunpack.c.l.b16 %v137
    %v458 = vunpack.c.h.b16 %v137
    %v459 = vunpack.c.l.b16 %v138
    %v460 = vunpack.c.h.b16 %v138
    %v461 = vunpack.c.l.b16 %v139
    %v462 = vunpack.c.h.b16 %v139
    %v463 = vunpack.c.l.b16 %v140
    %v464 = vunpack.c.h.b16 %v140
    %v465 = vunpack.c.l.b16 %v141
    %v466 = vunpack.c.h.b16 %v141
    %v467 = vunpack.c.l.b16 %v142
    %v468 = vunpack.c.h.b16 %v142
    %v469 = vunpack.c.l.b16 %v143
    %v470 = vunpack.c.h.b16 %v143
    %v471 = vunpack.c.l.b16 %v144
    %v472 = vunpack.c.h.b16 %v144
    %v473 = vunpack.c.l.b16 %v145
    %v474 = vunpack.c.h.b16 %v145
    %v475 = vunpack.c.l.b16 %v146
    %v476 = vunpack.c.h.b16 %v146
    %v477 = vunpack.c.l.b16 %v147
    %v478 = vunpack.c.h.b16 %v147
    %v479 = vunpack.c.l.b16 %v148
    %v480 = vunpack.c.h.b16 %v148
    %v481 = vunpack.c.l.b16 %v149
    %v482 = vunpack.c.h.b16 %v149
    %v483 = vunpack.c.l.b16 %v150
    %v484 = vunpack.c.h.b16 %v150
    %v485 = vunpack.c.l.b16 %v151
    %v486 = vunpack.c.h.b16 %v151
    %v487 = vunpack.c.l.b16 %v152
    %v488 = vunpack.c.h.b16 %v152
    %v489 = vunpack.c.l.b16 %v153
    %v490 = vunpack.c.h.b16 %v153
    %v491 = vunpack.c.l.b16 %v154
    %v492 = vunpack.c.h.b16 %v154
    %v493 = vunpack.c.l.b16 %v155
    %v494 = vunpack.c.h.b16 %v155
    %v495 = vunpack.c.l.b16 %v156
    %v496 = vunpack.c.h.b16 %v156
    %v497 = vunpack.c.l.b16 %v157
    %v498 = vunpack.c.h.b16 %v157
    %v499 = vunpack.c.l.b16 %v158
    %v500 = vunpack.c.h.b16 %v158
    %v501 = vunpack.c.l.b16 %v159
    %v502 = vunpack.c.h.b16 %v159
    %v503 = vunpack.c.l.b16 %v160
    %v504 = vunpack.c.h.b16 %v160
    %v505 = vunpack.c.l.b16 %v161
    %v506 = vunpack.c.h.b16 %v161
    %v507 = vunpack.c.l.b16 %v162
    %v508 = vunpack.c.h.b16 %v162
    %v509 = vunpack.c.l.b16 %v163
    %v510 = vunpack.c.h.b16 %v163
    %v511 = vunpack.c.l.b16 %v164
    %v512 = vunpack.c.h.b16 %v164
    %v513 = vunpack.c.l.b16 %v165
    %v514 = vunpack.c.h.b16 %v165
    %v515 = vunpack.c.l.b16 %v166
    %v516 = vunpack.c.h.b16 %v166
    %v517 = vunpack.c.l.b16 %v167
    %v518 = vunpack.c.h.b16 %v167
    %v519 = vunpack.c.l.b16 %v168
    %v520 = vunpack.c.h.b16 %v168
    %v521 = vunpack.c.l.b16 %v169
    %v522 = vunpack.c.h.b16 %v169
    %v523 = vunpack.c.l.b16 %v170
    %v524 = vunpack.c.h.b16 %v170
    %v525 = vunpack.c.l.b16 %v171
    %v526 = vunpack.c.h.b16 %v171
    %v527 = vunpack.c.l.b16 %v172
    %v528 = vunpack.c.h.b16 %v172
    %v529 = vunpack.c.l.b16 %v173
    %v530 = vunpack.c.h.b16 %v173
    %v531 = vunpack.c.l.b16 %v174
    %v532 = vunpack.c.h.b16 %v174
    %v533 = vunpack.c.l.b16 %v175
    %v534 = vunpack.c.h.b16 %v175
    %v535 = vunpack.c.l.b16 %v176
    %v536 = vunpack.c.h.b16 %v176
    %v537 = vunpack.c.l.b16 %v177
    %v538 = vunpack.c.h.b16 %v177
    %v539 = vunpack.c.l.b16 %v178
    %v540 = vunpack.c.h.b16 %v178
    %v541 = vunpack.c.l.b16 %v179
    %v542 = vunpack.c.h.b16 %v179
    %v543 = vunpack.c.l.b16 %v180
    %v544 = vunpack.c.h.b16 %v180
    %v545 = vunpack.c.l.b16 %v181
    %v546 = vunpack.c.h.b16 %v181
    %v547 = vunpack.c.l.b16 %v182
    %v548 = vunpack.c.h.b16 %v182
    %v549 = vunpack.c.l.b16 %v183
    %v550 = vunpack.c.h.b16 %v183
    %v551 = vunpack.c.l.b16 %v184
    %v552 = vunpack.c.h.b16 %v184
    %v553 = vunpack.c.l.b16 %v185
    %v554 = vunpack.c.h.b16 %v185
    %v555 = vunpack.c.l.b16 %v186
    %v556 = vunpack.c.h.b16 %v186
    %v557 = vunpack.c.l.b16 %v187
    %v558 = vunpack.c.h.b16 %v187
    %v559 = vunpack.c.l.b16 %v188
    %v560 = vunpack.c.h.b16 %v188
    %v561 = vunpack.c.l.b16 %v189
    %v562 = vunpack.c.h.b16 %v189
    %v563 = vunpack.c.l.b16 %v190
    %v564 = vunpack.c.h.b16 %v190
    %v565 = vunpack.c.l.b16 %v191
    %v566 = vunpack.c.h.b16 %v191
    %v567 = vunpack.c.l.b16 %v192
    %v568 = vunpack.c.h.b16 %v192
    %v569 = vunpack.c.l.b16 %v193
    %v570 = vunpack.c.h.b16 %v193
    %v571 = vunpack.c.l.b16 %v194
    %v572 = vunpack.c.h.b16 %v194
    %v573 = vunpack.c.l.b16 %v195
    %v574 = vunpack.c.h.b16 %v195
    %v575 = vunpack.c.l.b16 %v196
    %v576 = vunpack.c.h.b16 %v196
    %v577 = vunpack.c.l.b16 %v197
    %v578 = vunpack.c.h.b16 %v197
    %v579 = vunpack.c.l.b16 %v198
    %v580 = vunpack.c.h.b16 %v198
    %v581 = vunpack.c.l.b16 %v199
    %v582 = vunpack.c.h.b16 %v199
    %v583 = vunpack.c.l.b16 %v200
    %v584 = vunpack.c.h.b16 %v200
    %v585 = vpack.c.b16 %v363, %v361
    %v586 = vpack.c.b16 %v364, %v362
    %v587 = vpack.c.b16 %v367, %v365
    %v588 = vpack.c.b16 %v368, %v366
    %v589 = vpack.c.b16 %v371, %v369
    %v590 = vpack.c.b16 %v372, %v370
    %v591 = vpack.c.b16 %v375, %v373
    %v592 = vpack.c.b16 %v376, %v374
    %v593 = vpack.c.b16 %v379, %v377
    %v594 = vpack.c.b16 %v380, %v378
    %v595 = vpack.c.b16 %v383, %v381
    %v596 = vpack.c.b16 %v384, %v382
    %v597 = vpack.c.b16 %v387, %v385
    %v598 = vpack.c.b16 %v388, %v386
    %v599 = vpack.c.b16 %v391, %v389
    %v600 = vpack.c.b16 %v392, %v390
    %v601 = vpack.c.b16 %v395, %v393
    %v602 = vpack.c.b16 %v396, %v394
    %v603 = vpack.c.b16 %v399, %v397
    %v604 = vpack.c.b16 %v400, %v398
    %v605 = vpack.c.b16 %v403, %v401
    %v606 = vpack.c.b16 %v404, %v402
    %v607 = vpack.c.b16 %v407, %v405
    %v608 = vpack.c.b16 %v408, %v406
    %v609 = vpack.c.b16 %v411, %v409
    %v610 = vpack.c.b16 %v412, %v410
    %v611 = vpack.c.b16 %v415, %v413
    %v612 = vpack.c.b16 %v416, %v414
    %v613 = vpack.c.b16 %v419, %v417
    %v614 = vpack.c.b16 %v420, %v418
    %v615 = vpack.c.b16 %v423, %v421
    %v616 = vpack.c.b16 %v424, %v422
    %v617 = vpack.c.b16 %v427, %v425
    %v618 = vpack.c.b16 %v428, %v426
    %v619 = vpack.c.b16 %v431, %v429
    %v620 = vpack.c.b16 %v432, %v430
    %v621 = vpack.c.b16 %v435, %v433
    %v622 = vpack.c.b16 %v436, %v434
    %v623 = vpack.c.b16 %v439, %v437
    %v624 = vpack.c.b16 %v440, %v438
    %v625 = vpack.c.b16 %v443, %v441
    %v626 = vpack.c.b16 %v444, %v442
    %v627 = vpack.c.b16 %v447, %v445
    %v628 = vpack.c.b16 %v448, %v446
    %v629 = vpack.c.b16 %v451, %v449
    %v630 = vpack.c.b16 %v452, %v450
    %v631 = vpack.c.b16 %v455, %v453
    %v632 = vpack.c.b16 %v456, %v454
    %v633 = vpack.c.b16 %v459, %v457
    %v634 = vpack.c.b16 %v460, %v458
    %v635 = vpack.c.b16 %v463, %v461
    %v636 = vpack.c.b16 %v464, %v462
    %v637 = vpack.c.b16 %v467, %v465
    %v638 = vpack.c.b16 %v468, %v466
    %v639 = vpack.c.b16 %v471, %v469
    %v640 = vpack.c.b16 %v472, %v470
    %v641 = vpack.c.b16 %v475, %v473
    %v642 = vpack.c.b16 %v476, %v474
    %v643 = vpack.c.b16 %v479, %v477
    %v644 = vpack.c.b16 %v480, %v478
    %v645 = vpack.c.b16 %v483, %v481
    %v646 = vpack.c.b16 %v484, %v482
    %v647 = vpack.c.b16 %v487, %v485
    %v648 = vpack.c.b16 %v488, %v486
    %v649 = vpack.c.b16 %v491, %v489
    %v650 = vpack.c.b16 %v492, %v490
    %v651 = vpack.c.b16 %v495, %v493
    %v652 = vpack.c.b16 %v496, %v494
    %v653 = vpack.c.b16 %v499, %v497
    %v654 = vpack.c.b16 %v500, %v498
    %v655 = vpack.c.b16 %v503, %v501
    %v656 = vpack.c.b16 %v504, %v502
    %v657 = vpack.c.b16 %v507, %v505
    %v658 = vpack.c.b16 %v508, %v506
    %v659 = vpack.c.b16 %v511, %v509
    %v660 = vpack.c.b16 %v512, %v510
    %v661 = vpack.c.b16 %v515, %v513
    %v662 = vpack.c.b16 %v516, %v514
    %v663 = vpack.c.b16 %v519, %v517
    %v664 = vpack.c.b16 %v520, %v518
    %v665 = vpack.c.b16 %v523, %v521
    %v666 = vpack.c.b16 %v524, %v522
    %v667 = vpack.c.b16 %v527, %v525
    %v668 = vpack.c.b16 %v528, %v526
    %v669 = vpack.c.b16 %v531, %v529
    %v670 = vpack.c.b16 %v532, %v530
    %v671 = vpack.c.b16 %v535, %v533
    %v672 = vpack.c.b16 %v536, %v534
    %v673 = vpack.c.b16 %v539, %v537
    %v674 = vpack.c.b16 %v540, %v538
    %v675 = vpack.c.b16 %v543, %v541
    %v676 = vpack.c.b16 %v544, %v542
    %v677 = vpack.c.b16 %v547, %v545
    %v678 = vpack.c.b16 %v548, %v546
    %v679 = vpack.c.b16 %v551, %v549
    %v680 = vpack.c.b16 %v552, %v550
    %v681 = vpack.c.b16 %v555, %v553
    %v682 = vpack.c.b16 %v556, %v554
    %v683 = vpack.c.b16 %v559, %v557
    %v684 = vpack.c.b16 %v560, %v558
    %v685 = vpack.c.b16 %v563, %v561
    %v686 = vpack.c.b16 %v564, %v562
    %v687 = vpack.c.b16 %v567, %v565
    %v688 = vpack.c.b16 %v568, %v566
    %v689 = vpack.c.b16 %v571, %v569
    %v690 = vpack.c.b16 %v572, %v570
    %v691 = vpack.c.b16 %v575, %v573
    %v692 = vpack.c.b16 %v576, %v574
    %v693 = vpack.c.b16 %v579, %v577
    %v694 = vpack.c.b16 %v580, %v578
    %v695 = vpack.c.b16 %v583, %v581
    %v696 = vpack.c.b16 %v584, %v582
    %809 = vmatprep.subr.bf16.mxu0 %v586
    %810 = vmatpush1.bf16.msra.mxu0 %v585
    %811 = vmatprep.subr.bf16.mxu0 %v588
    %812 = vmatpush1.bf16.msra.mxu0 %v587
    %813 = vmatprep.subr.bf16.mxu0 %v590
    %814 = vmatpush1.bf16.msra.mxu0 %v589
    %815 = vmatprep.subr.bf16.mxu0 %v592
    %816 = vmatpush1.bf16.msra.mxu0 %v591
    %817 = vmatprep.subr.bf16.mxu0 %v594
    %818 = vmatpush1.bf16.msra.mxu0 %v593
    %819 = vmatprep.subr.bf16.mxu0 %v596
    %820 = vmatpush1.bf16.msra.mxu0 %v595
    %821 = vmatprep.subr.bf16.mxu0 %v598
    %822 = vmatpush1.bf16.msra.mxu0 %v597
    %823 = vmatprep.subr.bf16.mxu0 %v600
    %824 = vmatpush1.bf16.msra.mxu0 %v599
    %825 = vmatprep.subr.bf16.mxu0 %v602
    %826 = vmatpush1.bf16.msra.mxu0 %v601
    %827 = vmatprep.subr.bf16.mxu0 %v604
    %828 = vmatpush1.bf16.msra.mxu0 %v603
    %829 = vmatprep.subr.bf16.mxu0 %v606
    %830 = vmatpush1.bf16.msra.mxu0 %v605
    %831 = vmatprep.subr.bf16.mxu0 %v608
    %832 = vmatpush1.bf16.msra.mxu0 %v607
    %833 = vmatprep.subr.bf16.mxu0 %v610
    %834 = vmatpush1.bf16.msra.mxu0 %v609
    %835 = vmatprep.subr.bf16.mxu0 %v612
    %836 = vmatpush1.bf16.msra.mxu0 %v611
    %837 = vmatprep.subr.bf16.mxu0 %v614
    %838 = vmatpush1.bf16.msra.mxu0 %v613
    %839 = vmatprep.subr.bf16.mxu0 %v616
    %840 = vmatpush1.bf16.msra.mxu0 %v615
    %841 = vmatprep.mubr.bf16.mxu0 %v236
    %842 = vmatmul.mubr.bf16.gmra.mrb[0].mxu0 %v235
    %v843 = vpop.f32.mrb[0].mxu0
    %v844 = vadd.f32 %v206, %v843
    %v845 = vpop.f32.mrb[0].mxu0
    %v846 = vadd.f32 %v210, %v845
    %v847 = vpop.f32.mrb[0].mxu0
    %v848 = vadd.f32 %v206, %v847
    %v849 = vpop.f32.mrb[0].mxu0
    %v850 = vadd.f32 %v210, %v849
    %851 = vdwg.mxu0
    %852 = vmatprep.subr.bf16.mxu0 %v618
    %853 = vmatpush1.bf16.msra.mxu0 %v617
    %854 = vmatprep.subr.bf16.mxu0 %v620
    %855 = vmatpush1.bf16.msra.mxu0 %v619
    %856 = vmatprep.subr.bf16.mxu0 %v622
    %857 = vmatpush1.bf16.msra.mxu0 %v621
    %858 = vmatprep.subr.bf16.mxu0 %v624
    %859 = vmatpush1.bf16.msra.mxu0 %v623
    %860 = vmatprep.subr.bf16.mxu0 %v626
    %861 = vmatpush1.bf16.msra.mxu0 %v625
    %862 = vmatprep.subr.bf16.mxu0 %v628
    %863 = vmatpush1.bf16.msra.mxu0 %v627
    %864 = vmatprep.subr.bf16.mxu0 %v630
    %865 = vmatpush1.bf16.msra.mxu0 %v629
    %866 = vmatprep.subr.bf16.mxu0 %v632
    %867 = vmatpush1.bf16.msra.mxu0 %v631
    %868 = vmatprep.subr.bf16.mxu0 %v634
    %869 = vmatpush1.bf16.msra.mxu0 %v633
    %870 = vmatprep.subr.bf16.mxu0 %v636
    %871 = vmatpush1.bf16.msra.mxu0 %v635
    %872 = vmatprep.subr.bf16.mxu0 %v638
    %873 = vmatpush1.bf16.msra.mxu0 %v637
    %874 = vmatprep.subr.bf16.mxu0 %v640
    %875 = vmatpush1.bf16.msra.mxu0 %v639
    %876 = vmatprep.subr.bf16.mxu0 %v642
    %877 = vmatpush1.bf16.msra.mxu0 %v641
    %878 = vmatprep.subr.bf16.mxu0 %v644
    %879 = vmatpush1.bf16.msra.mxu0 %v643
    %880 = vmatprep.subr.bf16.mxu0 %v646
    %881 = vmatpush1.bf16.msra.mxu0 %v645
    %882 = vmatprep.subr.bf16.mxu0 %v648
    %883 = vmatpush1.bf16.msra.mxu0 %v647
    %884 = vmatprep.mubr.bf16.mxu0 %v238
    %885 = vmatmul.mubr.bf16.gmra.mrb[0].mxu0 %v237
    %v886 = vpop.f32.mrb[0].mxu0
    %v887 = vadd.f32 %v844, %v886
    %v888 = vpop.f32.mrb[0].mxu0
    %v889 = vadd.f32 %v846, %v888
    %v890 = vpop.f32.mrb[0].mxu0
    %v891 = vadd.f32 %v848, %v890
    %v892 = vpop.f32.mrb[0].mxu0
    %v893 = vadd.f32 %v850, %v892
    %894 = vdwg.mxu0
    %895 = vmatprep.subr.bf16.mxu0 %v650
    %896 = vmatpush1.bf16.msra.mxu0 %v649
    %897 = vmatprep.subr.bf16.mxu0 %v652
    %898 = vmatpush1.bf16.msra.mxu0 %v651
    %899 = vmatprep.subr.bf16.mxu0 %v654
    %900 = vmatpush1.bf16.msra.mxu0 %v653
    %901 = vmatprep.subr.bf16.mxu0 %v656
    %902 = vmatpush1.bf16.msra.mxu0 %v655
    %903 = vmatprep.subr.bf16.mxu0 %v658
    %904 = vmatpush1.bf16.msra.mxu0 %v657
    %905 = vmatprep.subr.bf16.mxu0 %v660
    %906 = vmatpush1.bf16.msra.mxu0 %v659
    %907 = vmatprep.subr.bf16.mxu0 %v662
    %908 = vmatpush1.bf16.msra.mxu0 %v661
    %909 = vmatprep.subr.bf16.mxu0 %v664
    %910 = vmatpush1.bf16.msra.mxu0 %v663
    %911 = vmatprep.subr.bf16.mxu0 %v666
    %912 = vmatpush1.bf16.msra.mxu0 %v665
    %913 = vmatprep.subr.bf16.mxu0 %v668
    %914 = vmatpush1.bf16.msra.mxu0 %v667
    %915 = vmatprep.subr.bf16.mxu0 %v670
    %916 = vmatpush1.bf16.msra.mxu0 %v669
    %917 = vmatprep.subr.bf16.mxu0 %v672
    %918 = vmatpush1.bf16.msra.mxu0 %v671
    %919 = vmatprep.subr.bf16.mxu0 %v674
    %920 = vmatpush1.bf16.msra.mxu0 %v673
    %921 = vmatprep.subr.bf16.mxu0 %v676
    %922 = vmatpush1.bf16.msra.mxu0 %v675
    %923 = vmatprep.subr.bf16.mxu0 %v678
    %924 = vmatpush1.bf16.msra.mxu0 %v677
    %925 = vmatprep.subr.bf16.mxu0 %v680
    %926 = vmatpush1.bf16.msra.mxu0 %v679
    %927 = vmatprep.mubr.bf16.mxu0 %v240
    %928 = vmatmul.mubr.bf16.gmra.mrb[0].mxu0 %v239
    %v929 = vpop.f32.mrb[0].mxu0
    %v930 = vadd.f32 %v887, %v929
    %v931 = vpop.f32.mrb[0].mxu0
    %v932 = vadd.f32 %v889, %v931
    %v933 = vpop.f32.mrb[0].mxu0
    %v934 = vadd.f32 %v891, %v933
    %v935 = vpop.f32.mrb[0].mxu0
    %v936 = vadd.f32 %v893, %v935
    %937 = vdwg.mxu0
    %938 = vmatprep.subr.bf16.mxu0 %v682
    %939 = vmatpush1.bf16.msra.mxu0 %v681
    %940 = vmatprep.subr.bf16.mxu0 %v684
    %941 = vmatpush1.bf16.msra.mxu0 %v683
    %942 = vmatprep.subr.bf16.mxu0 %v686
    %943 = vmatpush1.bf16.msra.mxu0 %v685
    %944 = vmatprep.subr.bf16.mxu0 %v688
    %945 = vmatpush1.bf16.msra.mxu0 %v687
    %946 = vmatprep.subr.bf16.mxu0 %v690
    %947 = vmatpush1.bf16.msra.mxu0 %v689
    %948 = vmatprep.subr.bf16.mxu0 %v692
    %949 = vmatpush1.bf16.msra.mxu0 %v691
    %950 = vmatprep.subr.bf16.mxu0 %v694
    %951 = vmatpush1.bf16.msra.mxu0 %v693
    %952 = vmatprep.subr.bf16.mxu0 %v696
    %953 = vmatpush1.bf16.msra.mxu0 %v695
    %954 = vmatprep.subr.bf16.mxu0 0
    %955 = vmatpush1.bf16.msra.mxu0 0
    %956 = vmatprep.subr.bf16.mxu0 0
    %957 = vmatpush1.bf16.msra.mxu0 0
    %958 = vmatprep.subr.bf16.mxu0 0
    %959 = vmatpush1.bf16.msra.mxu0 0
    %960 = vmatprep.subr.bf16.mxu0 0
    %961 = vmatpush1.bf16.msra.mxu0 0
    %962 = vmatprep.subr.bf16.mxu0 0
    %963 = vmatpush1.bf16.msra.mxu0 0
    %964 = vmatprep.subr.bf16.mxu0 0
    %965 = vmatpush1.bf16.msra.mxu0 0
    %966 = vmatprep.subr.bf16.mxu0 0
    %967 = vmatpush1.bf16.msra.mxu0 0
    %968 = vmatprep.subr.bf16.mxu0 0
    %969 = vmatpush1.bf16.msra.mxu0 0
    %970 = vmatprep.mubr.bf16.mxu0 0
    %971 = vmatmul.mubr.bf16.gmra.mrb[0].mxu0 %v241
    %v972 = vpop.f32.mrb[0].mxu0
    %v973 = vadd.f32 %v930, %v972
    %v974 = vpop.f32.mrb[0].mxu0
    %v975 = vadd.f32 %v932, %v974
    %v976 = vpop.f32.mrb[0].mxu0
    %v977 = vadd.f32 %v934, %v976
    %v978 = vpop.f32.mrb[0].mxu0
    %v979 = vadd.f32 %v936, %v978
    %980 = vdwg.mxu0
    %v981 = vmax.f32 %v973, 0.0
    %v982 = vmax.f32 %v975, 0.0
    %v983 = vmax.f32 %v977, 0.0
    %v984 = vmax.f32 %v979, 0.0
    %v985 = vpack.c.bf16 %v983, %v981
    %v986 = vpack.c.bf16 %v984, %v982
    %v989 = vunpack.c.l.b16 %v985
    %v990 = vunpack.c.l.b16 %v986
    %v991 = vunpack.c.h.b16 %v985
    %v992 = vunpack.c.h.b16 %v986
    %v993 = vpack.c.b16 %v990, %v989
    %v994 = vpack.c.b16 %v992, %v991
    %997 = vst [vmem:[%s7] sm:$0xff] %v993
    %998 = vst [vmem:[%s7 + $0x8] sm:$0xff] %v994
    %v999 = vld [vmem:[#allocation6] sm:$0xff]
    %v1000 = vld [vmem:[#allocation6 + $0x8] sm:$0xff]
    %v1001 = vld [vmem:[#allocation6 + $0x10] sm:$0xff]
    %v1002 = vld [vmem:[#allocation6 + $0x18] sm:$0xff]
    %v1003 = vld [vmem:[#allocation6 + $0x20] sm:$0xff]
    %v1004 = vld [vmem:[#allocation6 + $0x28] sm:$0xff]
    %v1005 = vld [vmem:[#allocation6 + $0x30] sm:$0xff]
    %v1006 = vld [vmem:[#allocation6 + $0x38] sm:$0xff]
    %v1007 = vld [vmem:[#allocation6 + $0x40] sm:$0xff]
    %v1008 = vld [vmem:[#allocation6 + $0x48] sm:$0xff]
    %v1009 = vld [vmem:[#allocation6 + $0x50] sm:$0xff]
    %v1010 = vld [vmem:[#allocation6 + $0x58] sm:$0xff]
    %v1011 = vld [vmem:[#allocation6 + $0x60] sm:$0xff]
    %v1012 = vld [vmem:[#allocation6 + $0x68] sm:$0xff]
    %v1013 = vld [vmem:[#allocation6 + $0x70] sm:$0xff]
    %v1014 = vld [vmem:[#allocation6 + $0x78] sm:$0xff]
    %v1015 = vld [vmem:[#allocation6 + $0x80] sm:$0xff]
    %v1016 = vld [vmem:[#allocation6 + $0x88] sm:$0xff]
    %v1017 = vld [vmem:[#allocation6 + $0x90] sm:$0xff]
    %v1018 = vld [vmem:[#allocation6 + $0x98] sm:$0xff]
    %v1019 = vld [vmem:[#allocation6 + $0xa0] sm:$0xff]
    %v1020 = vld [vmem:[#allocation6 + $0xa8] sm:$0xff]
    %v1021 = vld [vmem:[#allocation6 + $0xb0] sm:$0xff]
    %v1022 = vld [vmem:[#allocation6 + $0xb8] sm:$0xff]
    %v1023 = vld [vmem:[#allocation6 + $0xc0] sm:$0xff]
    %v1024 = vld [vmem:[#allocation6 + $0xc8] sm:$0xff]
    %v1025 = vld [vmem:[#allocation6 + $0xd0] sm:$0xff]
    %v1026 = vld [vmem:[#allocation6 + $0xd8] sm:$0xff]
    %v1027 = vld [vmem:[#allocation6 + $0xe0] sm:$0xff]
    %v1028 = vld [vmem:[#allocation6 + $0xe8] sm:$0xff]
    %v1029 = vld [vmem:[#allocation6 + $0xf0] sm:$0xff]
    %v1030 = vld [vmem:[#allocation6 + $0xf8] sm:$0xff]
    %v1031 = vld [vmem:[#allocation7] sm:$0x3]
    %v1033 = vlaneseq
    %v1034 = vshrl.u32 %v1033, 7
    %v1035 = vsub.s32 0, %v1034
    %v1036 = vrot.slane %v1031, %v1035
    %v1037 = vlaneseq
    %v1038 = vshrl.u32 %v1037, 7
    %v1039 = vsub.s32 1, %v1038
    %v1040 = vrot.slane %v1031, %v1039
    %v1075 = vunpack.c.l.b16 %v999
    %v1076 = vunpack.c.h.b16 %v999
    %v1077 = vunpack.c.l.b16 %v1000
    %v1078 = vunpack.c.h.b16 %v1000
    %v1079 = vunpack.c.l.b16 %v1001
    %v1080 = vunpack.c.h.b16 %v1001
    %v1081 = vunpack.c.l.b16 %v1002
    %v1082 = vunpack.c.h.b16 %v1002
    %v1083 = vunpack.c.l.b16 %v1003
    %v1084 = vunpack.c.h.b16 %v1003
    %v1085 = vunpack.c.l.b16 %v1004
    %v1086 = vunpack.c.h.b16 %v1004
    %v1087 = vunpack.c.l.b16 %v1005
    %v1088 = vunpack.c.h.b16 %v1005
    %v1089 = vunpack.c.l.b16 %v1006
    %v1090 = vunpack.c.h.b16 %v1006
    %v1091 = vunpack.c.l.b16 %v1007
    %v1092 = vunpack.c.h.b16 %v1007
    %v1093 = vunpack.c.l.b16 %v1008
    %v1094 = vunpack.c.h.b16 %v1008
    %v1095 = vunpack.c.l.b16 %v1009
    %v1096 = vunpack.c.h.b16 %v1009
    %v1097 = vunpack.c.l.b16 %v1010
    %v1098 = vunpack.c.h.b16 %v1010
    %v1099 = vunpack.c.l.b16 %v1011
    %v1100 = vunpack.c.h.b16 %v1011
    %v1101 = vunpack.c.l.b16 %v1012
    %v1102 = vunpack.c.h.b16 %v1012
    %v1103 = vunpack.c.l.b16 %v1013
    %v1104 = vunpack.c.h.b16 %v1013
    %v1105 = vunpack.c.l.b16 %v1014
    %v1106 = vunpack.c.h.b16 %v1014
    %v1107 = vunpack.c.l.b16 %v1015
    %v1108 = vunpack.c.h.b16 %v1015
    %v1109 = vunpack.c.l.b16 %v1016
    %v1110 = vunpack.c.h.b16 %v1016
    %v1111 = vunpack.c.l.b16 %v1017
    %v1112 = vunpack.c.h.b16 %v1017
    %v1113 = vunpack.c.l.b16 %v1018
    %v1114 = vunpack.c.h.b16 %v1018
    %v1115 = vunpack.c.l.b16 %v1019
    %v1116 = vunpack.c.h.b16 %v1019
    %v1117 = vunpack.c.l.b16 %v1020
    %v1118 = vunpack.c.h.b16 %v1020
    %v1119 = vunpack.c.l.b16 %v1021
    %v1120 = vunpack.c.h.b16 %v1021
    %v1121 = vunpack.c.l.b16 %v1022
    %v1122 = vunpack.c.h.b16 %v1022
    %v1123 = vunpack.c.l.b16 %v1023
    %v1124 = vunpack.c.h.b16 %v1023
    %v1125 = vunpack.c.l.b16 %v1024
    %v1126 = vunpack.c.h.b16 %v1024
    %v1127 = vunpack.c.l.b16 %v1025
    %v1128 = vunpack.c.h.b16 %v1025
    %v1129 = vunpack.c.l.b16 %v1026
    %v1130 = vunpack.c.h.b16 %v1026
    %v1131 = vunpack.c.l.b16 %v1027
    %v1132 = vunpack.c.h.b16 %v1027
    %v1133 = vunpack.c.l.b16 %v1028
    %v1134 = vunpack.c.h.b16 %v1028
    %v1135 = vunpack.c.l.b16 %v1029
    %v1136 = vunpack.c.h.b16 %v1029
    %v1137 = vunpack.c.l.b16 %v1030
    %v1138 = vunpack.c.h.b16 %v1030
    %v1139 = vpack.c.b16 %v1077, %v1075
    %v1140 = vpack.c.b16 %v1078, %v1076
    %v1141 = vpack.c.b16 %v1081, %v1079
    %v1142 = vpack.c.b16 %v1082, %v1080
    %v1143 = vpack.c.b16 %v1085, %v1083
    %v1144 = vpack.c.b16 %v1086, %v1084
    %v1145 = vpack.c.b16 %v1089, %v1087
    %v1146 = vpack.c.b16 %v1090, %v1088
    %v1147 = vpack.c.b16 %v1093, %v1091
    %v1148 = vpack.c.b16 %v1094, %v1092
    %v1149 = vpack.c.b16 %v1097, %v1095
    %v1150 = vpack.c.b16 %v1098, %v1096
    %v1151 = vpack.c.b16 %v1101, %v1099
    %v1152 = vpack.c.b16 %v1102, %v1100
    %v1153 = vpack.c.b16 %v1105, %v1103
    %v1154 = vpack.c.b16 %v1106, %v1104
    %v1155 = vpack.c.b16 %v1109, %v1107
    %v1156 = vpack.c.b16 %v1110, %v1108
    %v1157 = vpack.c.b16 %v1113, %v1111
    %v1158 = vpack.c.b16 %v1114, %v1112
    %v1159 = vpack.c.b16 %v1117, %v1115
    %v1160 = vpack.c.b16 %v1118, %v1116
    %v1161 = vpack.c.b16 %v1121, %v1119
    %v1162 = vpack.c.b16 %v1122, %v1120
    %v1163 = vpack.c.b16 %v1125, %v1123
    %v1164 = vpack.c.b16 %v1126, %v1124
    %v1165 = vpack.c.b16 %v1129, %v1127
    %v1166 = vpack.c.b16 %v1130, %v1128
    %v1167 = vpack.c.b16 %v1133, %v1131
    %v1168 = vpack.c.b16 %v1134, %v1132
    %v1169 = vpack.c.b16 %v1137, %v1135
    %v1170 = vpack.c.b16 %v1138, %v1136
    %1203 = vmatprep.subr.bf16.mxu0 %v1140
    %1204 = vmatpush1.bf16.msra.mxu0 %v1139
    %1205 = vmatprep.subr.bf16.mxu0 %v1142
    %1206 = vmatpush1.bf16.msra.mxu0 %v1141
    %1207 = vmatprep.subr.bf16.mxu0 %v1144
    %1208 = vmatpush1.bf16.msra.mxu0 %v1143
    %1209 = vmatprep.subr.bf16.mxu0 %v1146
    %1210 = vmatpush1.bf16.msra.mxu0 %v1145
    %1211 = vmatprep.subr.bf16.mxu0 %v1148
    %1212 = vmatpush1.bf16.msra.mxu0 %v1147
    %1213 = vmatprep.subr.bf16.mxu0 %v1150
    %1214 = vmatpush1.bf16.msra.mxu0 %v1149
    %1215 = vmatprep.subr.bf16.mxu0 %v1152
    %1216 = vmatpush1.bf16.msra.mxu0 %v1151
    %1217 = vmatprep.subr.bf16.mxu0 %v1154
    %1218 = vmatpush1.bf16.msra.mxu0 %v1153
    %1219 = vmatprep.subr.bf16.mxu0 %v1156
    %1220 = vmatpush1.bf16.msra.mxu0 %v1155
    %1221 = vmatprep.subr.bf16.mxu0 %v1158
    %1222 = vmatpush1.bf16.msra.mxu0 %v1157
    %1223 = vmatprep.subr.bf16.mxu0 %v1160
    %1224 = vmatpush1.bf16.msra.mxu0 %v1159
    %1225 = vmatprep.subr.bf16.mxu0 %v1162
    %1226 = vmatpush1.bf16.msra.mxu0 %v1161
    %1227 = vmatprep.subr.bf16.mxu0 %v1164
    %1228 = vmatpush1.bf16.msra.mxu0 %v1163
    %1229 = vmatprep.subr.bf16.mxu0 %v1166
    %1230 = vmatpush1.bf16.msra.mxu0 %v1165
    %1231 = vmatprep.subr.bf16.mxu0 %v1168
    %1232 = vmatpush1.bf16.msra.mxu0 %v1167
    %1233 = vmatprep.subr.bf16.mxu0 %v1170
    %1234 = vmatpush1.bf16.msra.mxu0 %v1169
    %1235 = vmatprep.mubr.bf16.mxu0 %v986
    %1236 = vmatmul.mubr.bf16.gmra.mrb[0].mxu0 %v985
    %v1237 = vpop.f32.mrb[0].mxu0
    %v1238 = vadd.f32 %v1036, %v1237
    %v1239 = vpop.f32.mrb[0].mxu0
    %v1240 = vadd.f32 %v1040, %v1239
    %v1241 = vpop.f32.mrb[0].mxu0
    %v1242 = vadd.f32 %v1036, %v1241
    %v1243 = vpop.f32.mrb[0].mxu0
    %v1244 = vadd.f32 %v1040, %v1243
    %1245 = vdwg.mxu0
    %v1246 = vmax.f32 %v1238, 0.0
    %v1247 = vmax.f32 %v1240, 0.0
    %v1248 = vmax.f32 %v1242, 0.0
    %v1249 = vmax.f32 %v1244, 0.0
    %v1250 = vpack.c.bf16 %v1248, %v1246
    %v1251 = vpack.c.bf16 %v1249, %v1247
    %v1254 = vunpack.c.l.b16 %v1250
    %v1255 = vunpack.c.l.b16 %v1251
    %v1256 = vunpack.c.h.b16 %v1250
    %v1257 = vunpack.c.h.b16 %v1251
    %v1258 = vpack.c.b16 %v1255, %v1254
    %v1259 = vpack.c.b16 %v1257, %v1256
    %1262 = vst [vmem:[%s8] sm:$0xff] %v1258
    %1263 = vst [vmem:[%s8 + $0x8] sm:$0xff] %v1259
    %v1264 = vld [vmem:[%s5] sm:$0xf]
    %v1265 = vld [vmem:[%s5 + $0x4] sm:$0xf]
    %v1266 = vld [vmem:[%s5 + $0x8] sm:$0xf]
    %v1267 = vld [vmem:[%s5 + $0xc] sm:$0xf]
    %v1268 = vld [vmem:[%s5 + $0x10] sm:$0xf]
    %v1269 = vld [vmem:[%s5 + $0x14] sm:$0xf]
    %v1270 = vld [vmem:[%s5 + $0x18] sm:$0xf]
    %v1271 = vld [vmem:[%s5 + $0x1c] sm:$0xf]
    %v1272 = vld [vmem:[%s5 + $0x20] sm:$0xf]
    %v1273 = vld [vmem:[%s5 + $0x24] sm:$0xf]
    %v1274 = vld [vmem:[%s5 + $0x28] sm:$0xf]
    %v1275 = vld [vmem:[%s5 + $0x2c] sm:$0xf]
    %v1276 = vld [vmem:[%s5 + $0x30] sm:$0xf]
    %v1277 = vld [vmem:[%s5 + $0x34] sm:$0xf]
    %v1278 = vld [vmem:[%s5 + $0x38] sm:$0xf]
    %v1279 = vld [vmem:[%s5 + $0x3c] sm:$0xf]
    %v1280 = vld [vmem:[%s5 + $0x40] sm:$0xf]
    %v1281 = vld [vmem:[%s5 + $0x44] sm:$0xf]
    %v1282 = vld [vmem:[%s5 + $0x48] sm:$0xf]
    %v1283 = vld [vmem:[%s5 + $0x4c] sm:$0xf]
    %v1284 = vld [vmem:[%s5 + $0x50] sm:$0xf]
    %v1285 = vld [vmem:[%s5 + $0x54] sm:$0xf]
    %v1286 = vld [vmem:[%s5 + $0x58] sm:$0xf]
    %v1287 = vld [vmem:[%s5 + $0x5c] sm:$0xf]
    %v1288 = vld [vmem:[%s5 + $0x60] sm:$0xf]
    %v1289 = vld [vmem:[%s5 + $0x64] sm:$0xf]
    %v1290 = vld [vmem:[%s5 + $0x68] sm:$0xf]
    %v1291 = vld [vmem:[%s5 + $0x6c] sm:$0xf]
    %v1292 = vld [vmem:[%s5 + $0x70] sm:$0xf]
    %v1293 = vld [vmem:[%s5 + $0x74] sm:$0xf]
    %v1294 = vld [vmem:[%s5 + $0x78] sm:$0xf]
    %v1295 = vld [vmem:[%s5 + $0x7c] sm:$0xf]
    %v1296 = vld [vmem:[%s6] sm:$0x1]
    %v1298 = vlaneseq
    %v1299 = vshrl.u32 %v1298, 7
    %v1300 = vsub.s32 0, %v1299
    %v1301 = vrot.slane %v1296, %v1300
    %v1335 = vunpack.c.l.b16 %v1264
    %v1336 = vunpack.c.l.b16 %v1265
    %v1337 = vunpack.c.l.b16 %v1266
    %v1338 = vunpack.c.l.b16 %v1267
    %v1339 = vunpack.c.l.b16 %v1268
    %v1340 = vunpack.c.l.b16 %v1269
    %v1341 = vunpack.c.l.b16 %v1270
    %v1342 = vunpack.c.l.b16 %v1271
    %v1343 = vunpack.c.l.b16 %v1272
    %v1344 = vunpack.c.l.b16 %v1273
    %v1345 = vunpack.c.l.b16 %v1274
    %v1346 = vunpack.c.l.b16 %v1275
    %v1347 = vunpack.c.l.b16 %v1276
    %v1348 = vunpack.c.l.b16 %v1277
    %v1349 = vunpack.c.l.b16 %v1278
    %v1350 = vunpack.c.l.b16 %v1279
    %v1351 = vunpack.c.l.b16 %v1280
    %v1352 = vunpack.c.l.b16 %v1281
    %v1353 = vunpack.c.l.b16 %v1282
    %v1354 = vunpack.c.l.b16 %v1283
    %v1355 = vunpack.c.l.b16 %v1284
    %v1356 = vunpack.c.l.b16 %v1285
    %v1357 = vunpack.c.l.b16 %v1286
    %v1358 = vunpack.c.l.b16 %v1287
    %v1359 = vunpack.c.l.b16 %v1288
    %v1360 = vunpack.c.l.b16 %v1289
    %v1361 = vunpack.c.l.b16 %v1290
    %v1362 = vunpack.c.l.b16 %v1291
    %v1363 = vunpack.c.l.b16 %v1292
    %v1364 = vunpack.c.l.b16 %v1293
    %v1365 = vunpack.c.l.b16 %v1294
    %v1366 = vunpack.c.l.b16 %v1295
    %v1367 = vpack.c.b16 %v1336, %v1335
    %v1368 = vpack.c.b16 %v1338, %v1337
    %v1369 = vpack.c.b16 %v1340, %v1339
    %v1370 = vpack.c.b16 %v1342, %v1341
    %v1371 = vpack.c.b16 %v1344, %v1343
    %v1372 = vpack.c.b16 %v1346, %v1345
    %v1373 = vpack.c.b16 %v1348, %v1347
    %v1374 = vpack.c.b16 %v1350, %v1349
    %v1375 = vpack.c.b16 %v1352, %v1351
    %v1376 = vpack.c.b16 %v1354, %v1353
    %v1377 = vpack.c.b16 %v1356, %v1355
    %v1378 = vpack.c.b16 %v1358, %v1357
    %v1379 = vpack.c.b16 %v1360, %v1359
    %v1380 = vpack.c.b16 %v1362, %v1361
    %v1381 = vpack.c.b16 %v1364, %v1363
    %v1382 = vpack.c.b16 %v1366, %v1365
    %1399 = vmatprep.subr.bf16.mxu0 0
    %1400 = vmatpush1.bf16.msra.mxu0 %v1367
    %1401 = vmatprep.subr.bf16.mxu0 0
    %1402 = vmatpush1.bf16.msra.mxu0 %v1368
    %1403 = vmatprep.subr.bf16.mxu0 0
    %1404 = vmatpush1.bf16.msra.mxu0 %v1369
    %1405 = vmatprep.subr.bf16.mxu0 0
    %1406 = vmatpush1.bf16.msra.mxu0 %v1370
    %1407 = vmatprep.subr.bf16.mxu0 0
    %1408 = vmatpush1.bf16.msra.mxu0 %v1371
    %1409 = vmatprep.subr.bf16.mxu0 0
    %1410 = vmatpush1.bf16.msra.mxu0 %v1372
    %1411 = vmatprep.subr.bf16.mxu0 0
    %1412 = vmatpush1.bf16.msra.mxu0 %v1373
    %1413 = vmatprep.subr.bf16.mxu0 0
    %1414 = vmatpush1.bf16.msra.mxu0 %v1374
    %1415 = vmatprep.subr.bf16.mxu0 0
    %1416 = vmatpush1.bf16.msra.mxu0 %v1375
    %1417 = vmatprep.subr.bf16.mxu0 0
    %1418 = vmatpush1.bf16.msra.mxu0 %v1376
    %1419 = vmatprep.subr.bf16.mxu0 0
    %1420 = vmatpush1.bf16.msra.mxu0 %v1377
    %1421 = vmatprep.subr.bf16.mxu0 0
    %1422 = vmatpush1.bf16.msra.mxu0 %v1378
    %1423 = vmatprep.subr.bf16.mxu0 0
    %1424 = vmatpush1.bf16.msra.mxu0 %v1379
    %1425 = vmatprep.subr.bf16.mxu0 0
    %1426 = vmatpush1.bf16.msra.mxu0 %v1380
    %1427 = vmatprep.subr.bf16.mxu0 0
    %1428 = vmatpush1.bf16.msra.mxu0 %v1381
    %1429 = vmatprep.subr.bf16.mxu0 0
    %1430 = vmatpush1.bf16.msra.mxu0 %v1382
    %1431 = vmatprep.mubr.bf16.mxu0 %v1251
    %1432 = vmatmul.mubr.bf16.gmra.mrb[0].mxu0 %v1250
    %v1433 = vpop.f32.mrb[0].mxu0
    %v1434 = vadd.f32 %v1301, %v1433
    %v1435 = vpop.f32.mrb[0].mxu0
    %v1436 = vpop.f32.mrb[0].mxu0
    %v1437 = vadd.f32 %v1301, %v1436
    %v1438 = vpop.f32.mrb[0].mxu0
    %1439 = vdwg.mxu0
    %1440 = vst [vmem:[%s9] sm:$0xff] %v1434
    %1441 = vst [vmem:[%s9 + $0x8] sm:$0xff] %v1437
    // Predicated region
    $region46: #{dense_net_forward.1} parent=1 // pred_check
      _
    $region47: #{dense_net_forward.1} parent=1 // pred_check_branch
      %1443 = sbr.rel (0) target = $region49
    $region48: #{dense_net_forward.1} parent=1 // pred_region
      _
    $region49: #{dense_net_forward.1} parent=1 // pred_fallthru
      _
    // Predicated region
    $region50: #{dense_net_forward.1} parent=1 // pred_check
      _
    $region51: #{dense_net_forward.1} parent=1 // pred_check_branch
      %1445 = sbr.rel (0) target = $region53
    $region52: #{dense_net_forward.1} parent=1 // pred_region
      _
    $region53: #{dense_net_forward.1} parent=1 // pred_fallthru
      _
    // Predicated region
    $region54: #{dense_net_forward.1} parent=1 // pred_check
      _
    $region55: #{dense_net_forward.1} parent=1 // pred_check_branch
      %1447 = sbr.rel (0) target = $region57
    $region56: #{dense_net_forward.1} parent=1 // pred_region
      _
    $region57: #{dense_net_forward.1} parent=1 // pred_fallthru
      _
    // Predicated region
    $region58: #{dense_net_forward.1} parent=1 // pred_check
      _
    $region59: #{dense_net_forward.1} parent=1 // pred_check_branch
      %1449 = sbr.rel (0) target = $region61
    $region60: #{dense_net_forward.1} parent=1 // pred_region
      _
    $region61: #{dense_net_forward.1} parent=1 // pred_fallthru
      _
    // Predicated region
    $region62: #{dense_net_forward.1} parent=1 // pred_check
      _
    $region63: #{dense_net_forward.1} parent=1 // pred_check_branch
      %1451 = sbr.rel (0) target = $region65
    $region64: #{dense_net_forward.1} parent=1 // pred_region
      _
    $region65: #{dense_net_forward.1} parent=1 // pred_fallthru
      _
    // Predicated region
    $region66: #{dense_net_forward.1} parent=1 // pred_check
      _
    $region67: #{dense_net_forward.1} parent=1 // pred_check_branch
      %1453 = sbr.rel (0) target = $region69
    $region68: #{dense_net_forward.1} parent=1 // pred_region
      _
    $region69: #{dense_net_forward.1} parent=1 // pred_fallthru
      _
    %1454 = vsyncpa [#allocation3], 1
    %1455 = vsyncpa [#allocation5], 1
    %1456 = vsyncpa [#allocation8], 1

</llo_original>
